<compile_context>
chip_gen: v7x
topology: tpu7x:2x2x1
jax: 0.10.0
libtpu: 0.0.40
codegen_flags: <defaults>
</compile_context>

<pallas_src>
import functools

import jax
import jax.numpy as jnp
from jax.experimental import pallas as pl
from jax.experimental.pallas import tpu as pltpu

NUM_NODES = 116
_LANE = 128
_MIN_STEP_BYTES = 512 * 1024  # target per-grid-step input traffic


def _round_up(x, m):
    return -(-x // m) * m


def _vmem_budgets():
    """Generation-aware (block budget, scoped-vmem cap) in bytes."""
    cap = 64 * 1024 * 1024  # conservative default: v7x per-TC VMEM
    try:
        info = pltpu.get_tpu_info()
        cap = int(getattr(info, "vmem_capacity_bytes", cap) or cap)
    except Exception:
        pass
    # ~50% of VMEM for blocks+temps, ~62.5% as the scoped-VMEM ceiling.
    return cap // 2, int(cap * 0.625)


def _node_norm_kernel(x_ref, o_ref, *, eps):
    # Block: (B, rt, 128).  Normalize each (row, lane) column over the full B axis.
    # Re-read (re-cast) the ref for the centered copy so that for sub-f32 inputs
    # only one full-block f32 temp (xc) needs to stay live; for f32 the casts are
    # no-ops and the extra load is a cheap VMEM vld.
    mean = jnp.mean(x_ref[...].astype(jnp.float32), axis=0, keepdims=True)
    xc = x_ref[...].astype(jnp.float32) - mean            # reused temp
    var = jnp.mean(xc * xc, axis=0, keepdims=True)        # biased (unbiased=False)
    inv_std = jax.lax.rsqrt(var + eps)                    # EUP rsqrt on tiny stats
    o_ref[...] = (xc * inv_std).astype(o_ref.dtype)


def _pick_rt(R, b, itemsize, block_budget, min_step_bytes=_MIN_STEP_BYTES):
    """Rows-of-128 per grid step.

    Policy: force >= 2 (preferably 4) grid steps whenever the R axis can be split
    at the dtype's sublane granularity, keep each step's input traffic near
    `min_step_bytes` or larger, and never exceed the VMEM block budget.
    """
    sub = {4: 8, 2: 16, 1: 32}.get(itemsize, 8)   # sublane pack of the dtype
    io_row = b * _LANE * itemsize                 # input bytes of one R-row
    # 2x double-buffered input + 2x output blocks + ~3 full-block f32 temps
    # (xc, product, cast path) -- packed 3-D layout, no hidden sublane padding.
    cost_row = 4 * io_row + 3 * b * _LANE * 4
    rt_cap = max(sub, (block_budget // max(cost_row, 1)) // sub * sub)

    total_io = R * io_row
    steps = min(4, max(2, total_io // min_step_bytes))   # 2..4 big steps preferred
    steps = max(steps, -(-R // rt_cap))                  # VMEM-forced minimum
    steps = min(steps, max(1, -(-R // sub)))             # can't split finer than sub
    if steps <= 1:
        return R                                         # axis too short to split
    rt = _round_up(-(-R // steps), sub)
    rt = min(rt, rt_cap)
    return R if rt >= R else rt


def node_norm(x, eps=1e-5, num_nodes=NUM_NODES):
    """x: (B*num_nodes, F) -> (B*num_nodes, F), normalized per element across B."""
    total, feat = x.shape
    assert total % num_nodes == 0, "leading dim must be a multiple of 116"
    b = total // num_nodes
    m = num_nodes * feat

    # Lane-dense flatten + 3-D view.  Normalization over B is per flattened
    # element, so this is semantics-preserving.
    m_pad = _round_up(m, _LANE)
    xr = x.reshape(b, m)
    if m_pad != m:
        # Pad to full lanes: avoids masked vst.msk partial stores.  Padded columns
        # are all-zero -> mean 0, var 0 -> finite output, sliced away below.
        xr = jnp.pad(xr, ((0, 0), (0, m_pad - m)))
    R = m_pad // _LANE
    x3 = xr.reshape(b, R, _LANE)

    itemsize = jnp.dtype(x.dtype).itemsize
    block_budget, vmem_cap = _vmem_budgets()
    rt = _pick_rt(R, b, itemsize, block_budget)
    grid = (pl.cdiv(R, rt),)   # partial last block: OOB rows are per-column garbage
                               # and their writes are discarded, so results are exact.

    # VMEM estimate for one step (same cost model as the picker).
    per_step = rt * (4 * b * _LANE * itemsize + 3 * b * _LANE * 4)
    vmem_limit = int(min(vmem_cap,
                         max(32 * 1024 * 1024, int(per_step * 1.25) + (2 << 20))))

    out = pl.pallas_call(
        functools.partial(_node_norm_kernel, eps=eps),
        out_shape=jax.ShapeDtypeStruct((b, R, _LANE), x.dtype),
        grid=grid,
        in_specs=[pl.BlockSpec((b, rt, _LANE), lambda j: (0, j, 0))],
        out_specs=pl.BlockSpec((b, rt, _LANE), lambda j: (0, j, 0)),
        compiler_params=pltpu.CompilerParams(
            dimension_semantics=("parallel",),
            vmem_limit_bytes=vmem_limit),
    )(x3)

    out = out.reshape(b, m_pad)
    if m_pad != m:
        out = out[:, :m]
    return out.reshape(total, feat)


def _node_norm_ref(x, eps=1e-5, num_nodes=NUM_NODES):
    b = x.shape[0] // num_nodes
    xr = x.reshape(b, num_nodes, -1).astype(jnp.float32)
    mean = jnp.mean(xr, axis=0, keepdims=True)
    std = jnp.sqrt(jnp.var(xr, axis=0, keepdims=True) + eps)
    y = (xr - mean) / std
    return y.reshape(b * num_nodes, -1).astype(x.dtype)


if __name__ == "__main__":
    # NodeNorm has no learnable parameters (__init__ only stores eps/unbiased).
    key = jax.random.PRNGKey(0)
    k1, k2, k3 = jax.random.split(key, 3)

    # Case 1: F=32 (m=3712 = 29*128) -> 3-D layout, multiple pipelined grid steps.
    B1, F1 = 4, 32
    x1 = jax.random.normal(k1, (B1 * NUM_NODES, F1), dtype=jnp.float32)
    y1 = node_norm(x1)
    jax.block_until_ready(y1)
    assert y1.shape == (B1 * NUM_NODES, F1)
    assert jnp.allclose(y1, _node_norm_ref(x1), atol=1e-4, rtol=1e-4)

    # Case 2: F=256 -> larger R axis, still >= 2 grid steps.
    B2, F2 = 2, 256
    x2 = jax.random.normal(k2, (B2 * NUM_NODES, F2), dtype=jnp.float32)
    y2 = node_norm(x2)
    jax.block_until_ready(y2)
    assert y2.shape == (B2 * NUM_NODES, F2)
    assert jnp.allclose(y2, _node_norm_ref(x2), atol=1e-4, rtol=1e-4)

    # Case 3: F=5 (m=580 not a multiple of 128) -> lane padding path.
    B3, F3 = 3, 5
    x3 = jax.random.normal(k3, (B3 * NUM_NODES, F3), dtype=jnp.float32)
    y3 = node_norm(x3)
    jax.block_until_ready(y3)
    assert y3.shape == (B3 * NUM_NODES, F3)
    assert jnp.allclose(y3, _node_norm_ref(x3), atol=1e-4, rtol=1e-4)

    print("KERNEL_OK")
</pallas_src>

<mosaic_0001>
module attributes {stable_mosaic.version = 11 : i64} {
  func.func @_node_norm_kernel(%arg0: i32, %arg1: memref<4x16x128xf32, #tpu.memory_space<vmem>>, %arg2: memref<4x16x128xf32, #tpu.memory_space<vmem>>) attributes {dimension_semantics = [#tpu.dimension_semantics<parallel>], iteration_bounds = array<i64: 2>, scalar_prefetch = 0 : i64, scratch_operands = 0 : i64, tpu.core_type = #tpu.core_type<tc>, window_params = [{transform_indices = @transform_0, window_bounds = array<i64: 4, 16, 128>}, {transform_indices = @transform_1, window_bounds = array<i64: 4, 16, 128>}]} {
    %c0 = arith.constant 0 : index
    %c0_0 = arith.constant 0 : index
    %c0_1 = arith.constant 0 : index
    %0 = vector.load %arg1[%c0, %c0_0, %c0_1] : memref<4x16x128xf32, #tpu.memory_space<vmem>>, vector<4x16x128xf32>
    %cst = arith.constant dense<0.000000e+00> : vector<16x128xf32>
    %1 = vector.multi_reduction <add>, %0, %cst [0] : vector<4x16x128xf32> to vector<16x128xf32>
    %2 = vector.shape_cast %1 : vector<16x128xf32> to vector<1x16x128xf32>
    %cst_2 = arith.constant 4.000000e+00 : f32
    %3 = vector.broadcast %cst_2 : f32 to vector<1x16x128xf32>
    %4 = arith.divf %2, %3 : vector<1x16x128xf32>
    %c0_3 = arith.constant 0 : index
    %c0_4 = arith.constant 0 : index
    %c0_5 = arith.constant 0 : index
    %5 = vector.load %arg1[%c0_3, %c0_4, %c0_5] : memref<4x16x128xf32, #tpu.memory_space<vmem>>, vector<4x16x128xf32>
    %6 = vector.broadcast %4 : vector<1x16x128xf32> to vector<4x16x128xf32>
    %7 = arith.subf %5, %6 : vector<4x16x128xf32>
    %8 = arith.mulf %7, %7 : vector<4x16x128xf32>
    %cst_6 = arith.constant dense<0.000000e+00> : vector<16x128xf32>
    %9 = vector.multi_reduction <add>, %8, %cst_6 [0] : vector<4x16x128xf32> to vector<16x128xf32>
    %10 = vector.shape_cast %9 : vector<16x128xf32> to vector<1x16x128xf32>
    %cst_7 = arith.constant 4.000000e+00 : f32
    %11 = vector.broadcast %cst_7 : f32 to vector<1x16x128xf32>
    %12 = arith.divf %10, %11 : vector<1x16x128xf32>
    %cst_8 = arith.constant 9.99999974E-6 : f32
    %13 = vector.broadcast %cst_8 : f32 to vector<1x16x128xf32>
    %14 = arith.addf %12, %13 : vector<1x16x128xf32>
    %15 = math.rsqrt %14 : vector<1x16x128xf32>
    %16 = vector.broadcast %15 : vector<1x16x128xf32> to vector<4x16x128xf32>
    %17 = arith.mulf %7, %16 : vector<4x16x128xf32>
    %c0_9 = arith.constant 0 : index
    %c0_10 = arith.constant 0 : index
    %c0_11 = arith.constant 0 : index
    %18 = vector.load %arg2[%c0_9, %c0_10, %c0_11] : memref<4x16x128xf32, #tpu.memory_space<vmem>>, vector<4x16x128xf32>
    tpu.vector_store %arg2[%c0_9, %c0_10, %c0_11], %17 {strides = array<i32>} : memref<4x16x128xf32, #tpu.memory_space<vmem>>, vector<4x16x128xf32>,
    return
  }
  func.func @transform_0(%arg0: i32) -> (i32, i32, i32) {
    %c0_i32 = arith.constant 0 : i32
    %c0_i32_0 = arith.constant 0 : i32
    %c0_i32_1 = arith.constant 0 : i32
    return %c0_i32, %arg0, %c0_i32_0 : i32, i32, i32
  }
  func.func @transform_1(%arg0: i32) -> (i32, i32, i32) {
    %c0_i32 = arith.constant 0 : i32
    %c0_i32_0 = arith.constant 0 : i32
    %c0_i32_1 = arith.constant 0 : i32
    return %c0_i32, %arg0, %c0_i32_0 : i32, i32, i32
  }
}

</mosaic_0001>

<llo_original>
// kernel: tpu_custom_call.1
$region0: #{tpu_custom_call.1}
  #allocation0 [shape = 'u32[]', space=smem, size = 0x4, offset = 0x4, fixed_abs, tag = 'smem constant byte address 0x4 - core index']
  #allocation1 [shape = 'u32[144,128]{1,0:T(1,128)}', space=vmem, size = 0x12000, scoped, tag = 'internal scratch']
  %s0 = inlined_call_operand.vmem [shape: f32[4,29,128], index: 0, kind: input, shape index: {}]
  %s1 = inlined_call_operand.vmem [shape: f32[4,29,128], index: 1, kind: output, shape index: {}]
  %s2 = sld [smem:[#allocation0]]
  $region109: #{tpu_custom_call.1} parent=0
    _
  %s4 = ssub.s32 1, %s2
  %s5 = scalar_select 0, %s4, %s2
  $region1: #{tpu_custom_call.1} parent=0
    #allocation2 [shape = 'u8[65536]{0}', space=vmem, size = 0x10000, scoped, tag = 'input window, operand 0']
    #allocation3 [shape = 'u8[65536]{0}', space=vmem, size = 0x10000, scoped, tag = 'output window, operand 0']
    loop: start=0, step=1, limit=4
    $region2: #{tpu_custom_call.1} parent=1 // loop_pre_header
      _
    $region3: #{tpu_custom_call.1} parent=1 // loop_header
      %s7 = sphi 0, %s11
      %p8 = scmp.ge.s32.totalorder %s7, 4
      %s17 = sphi 0, %s19
      %s20 = sphi 0, %s17
      %s21 = sphi 0, %s20
      %s37 = sphi 0, %s21
      %s43 = sphi 0, %s45
      %s46 = sphi 0, %s43
      %s47 = sphi 0, %s46
      %s63 = sphi 0, %s47
    $region4: #{tpu_custom_call.1} parent=1 // loop_header_branch
      %10 = sbr.rel (%p8) target = $region8
    $region5: #{tpu_custom_call.1} parent=1 // loop_body
      %s12 = ssub.s32 %s7, 1
      %s13 = ssub.s32 %s7, 2
      %s14 = sadd.s32 %s7, 1
      %s15 = ssub.s32 %s7, %s14
      %p16 = scmp.eq.s32.totalorder %s15, 0
      %s18 = sadd.s32 %s17, 1
      %s19 = scalar_select %p16, %s17, %s18
      %p22 = pneg %p16
      %p23 = scmp.eq.s32.totalorder %s7, 1
      %p24 = por %p22, %p23
      %p25 = scmp.ne.s32.totalorder %s17, %s20
      %p26 = scmp.eq.s32.totalorder %s7, 0
      %p27 = por %p25, %p26
      %p28 = scmp.ne.s32.totalorder %s17, %s20
      %p29 = scmp.eq.s32.totalorder %s12, 1
      %p30 = por %p28, %p29
      %p31 = scmp.ne.s32.totalorder %s20, %s21
      %p32 = scmp.eq.s32.totalorder %s12, 0
      %p33 = por %p31, %p32
      %p34 = scmp.ne.s32.totalorder %s20, %s21
      %p35 = scmp.eq.s32.totalorder %s13, 1
      %p36 = por %p34, %p35
      %p38 = scmp.ne.s32.totalorder %s21, %s37
      %p39 = scmp.eq.s32.totalorder %s13, 0
      %p40 = por %p38, %p39
      %s41 = ssub.s32 %s7, %s14
      %p42 = scmp.eq.s32.totalorder %s41, 0
      %s44 = sadd.s32 %s43, 1
      %s45 = scalar_select %p42, %s43, %s44
      %p48 = pneg %p42
      %p49 = scmp.eq.s32.totalorder %s7, 1
      %p50 = por %p48, %p49
      %p51 = scmp.ne.s32.totalorder %s43, %s46
      %p52 = scmp.eq.s32.totalorder %s7, 0
      %p53 = por %p51, %p52
      %p54 = scmp.ne.s32.totalorder %s43, %s46
      %p55 = scmp.eq.s32.totalorder %s12, 1
      %p56 = por %p54, %p55
      %p57 = scmp.ne.s32.totalorder %s46, %s47
      %p58 = scmp.eq.s32.totalorder %s12, 0
      %p59 = por %p57, %p58
      %p60 = scmp.ne.s32.totalorder %s46, %s47
      %p61 = scmp.eq.s32.totalorder %s13, 1
      %p62 = por %p60, %p61
      %p64 = scmp.ne.s32.totalorder %s47, %s63
      %p65 = scmp.eq.s32.totalorder %s13, 0
      %p66 = por %p64, %p65
      %p67 = scmp.le.s32.totalorder 1, %s7
      %p68 = scmp.lt.s32.totalorder %s7, 3
      %p69 = pnand %p67, %p68
      %p70 = pneg %p69
      // Predicated region
      $region9: #{tpu_custom_call.1} parent=5 // pred_check
        _
      $region10: #{tpu_custom_call.1} parent=5 // pred_check_branch
        %72 = sbr.rel (%p69) target = $region12
      $region11: #{tpu_custom_call.1} parent=5 // pred_region
        %s73 = ssub.s32 %s7, 1
      $region12: #{tpu_custom_call.1} parent=5 // pred_fallthru
        _
      %p74 = scmp.lt.s32.totalorder %s7, 2
      // Predicated region
      $region13: #{tpu_custom_call.1} parent=5 // pred_check
        %p75 = pneg %p74
      $region14: #{tpu_custom_call.1} parent=5 // pred_check_branch
        %77 = sbr.rel (%p75) target = $region16
      $region15: #{tpu_custom_call.1} parent=5 // pred_region
        // Predicated region
        $region17: #{tpu_custom_call.1} parent=15 // pred_check
          %p78 = pneg %p27
        $region18: #{tpu_custom_call.1} parent=15 // pred_check_branch
          %80 = sbr.rel (%p78) target = $region20
        $region19: #{tpu_custom_call.1} parent=15 // pred_region
          %s81 = sand.u32 %s17, 1
          %s82 = sand.u32 %s17, 1
          %s83 = smul.addr %s82, 64
          %s84 = scalar_lea.vmem [#allocation2], %s83
          %s85 = smul.u32 2, %s7
          %s86 = smul.addr %s85, 8
          %s87 = scalar_lea.vmem %s0, %s86
          // Predicated region
          $region21: #{tpu_custom_call.1} parent=19 // pred_check
            _
          $region22: #{tpu_custom_call.1} parent=19 // pred_check_branch
            %89 = sbr.rel (0) target = $region24
          $region23: #{tpu_custom_call.1} parent=19 // pred_region
            // Predicated region
            $region25: #{tpu_custom_call.1} parent=23 // pred_check
              _
            $region26: #{tpu_custom_call.1} parent=23 // pred_check_branch
              %91 = sbr.rel (0) target = $region28
            $region27: #{tpu_custom_call.1} parent=23 // pred_region
              // Predicated region
              $region40: #{tpu_custom_call.1} parent=27 // pred_check
                _
              $region41: #{tpu_custom_call.1} parent=27 // pred_check_branch
                %120 = sbr.rel (0) target = $region43
              $region42: #{tpu_custom_call.1} parent=27 // pred_region
                loop: start=0, step=1, limit=1
                $region44: #{tpu_custom_call.1} parent=42 // loop_pre_header
                  _
                $region45: #{tpu_custom_call.1} parent=42 // loop_header
                  %s122 = sphi 0, %s126
                  %p123 = scmp.ge.s32.totalorder %s122, 1
                  %s127 = sphi %s87, %s87
                  %s128 = sphi %s84, %s84
                $region46: #{tpu_custom_call.1} parent=42 // loop_header_branch
                  %125 = sbr.rel (%p123) target = $region50
                $region47: #{tpu_custom_call.1} parent=42 // loop_body
                  %v129 = vld [vmem:[%s127] sm:$0xff]
                  %130 = vst [vmem:[%s128] sm:$0xff] %v129
                  %v131 = vld [vmem:[%s127 + $0x8] sm:$0xff]
                  %132 = vst [vmem:[%s128 + $0x8] sm:$0xff] %v131
                  %v133 = vld [vmem:[%s127 + $0x20] sm:$0xff]
                  %134 = vst [vmem:[%s128 + $0x10] sm:$0xff] %v133
                  %v135 = vld [vmem:[%s127 + $0x28] sm:$0xff]
                  %136 = vst [vmem:[%s128 + $0x18] sm:$0xff] %v135
                  %v137 = vld [vmem:[%s127 + $0x40] sm:$0xff]
                  %138 = vst [vmem:[%s128 + $0x20] sm:$0xff] %v137
                  %v139 = vld [vmem:[%s127 + $0x48] sm:$0xff]
                  %140 = vst [vmem:[%s128 + $0x28] sm:$0xff] %v139
                  %v141 = vld [vmem:[%s127 + $0x60] sm:$0xff]
                  %142 = vst [vmem:[%s128 + $0x30] sm:$0xff] %v141
                  %v143 = vld [vmem:[%s127 + $0x68] sm:$0xff]
                  %144 = vst [vmem:[%s128 + $0x38] sm:$0xff] %v143
                $region48: #{tpu_custom_call.1} parent=42 // loop_footer
                  %s126 = sadd.s32 1, %s122
                $region49: #{tpu_custom_call.1} parent=42 // loop_footer_branch
                  %121 = sbr.rel target = $region45
                $region50: #{tpu_custom_call.1} parent=42 // loop_exit
                  _
              $region43: #{tpu_custom_call.1} parent=27 // pred_fallthru
                _
              // Predicated region
              $region51: #{tpu_custom_call.1} parent=27 // pred_check
                _
              $region52: #{tpu_custom_call.1} parent=27 // pred_check_branch
                %146 = sbr.rel target = $region54
              $region53: #{tpu_custom_call.1} parent=27 // pred_region
                _
              $region54: #{tpu_custom_call.1} parent=27 // pred_fallthru
                _
            $region28: #{tpu_custom_call.1} parent=23 // pred_fallthru
              _
            // Predicated region
            $region29: #{tpu_custom_call.1} parent=23 // pred_check
              _
            $region30: #{tpu_custom_call.1} parent=23 // pred_check_branch
              %93 = sbr.rel target = $region32
            $region31: #{tpu_custom_call.1} parent=23 // pred_region
              loop: start=0, step=1, limit=1
              $region33: #{tpu_custom_call.1} parent=31 // loop_pre_header
                _
              $region34: #{tpu_custom_call.1} parent=31 // loop_header
                %s96 = sphi 0, %s100
                %p97 = scmp.ge.s32.totalorder %s96, 1
                %s101 = sphi %s87, %s87
                %s102 = sphi %s84, %s84
              $region35: #{tpu_custom_call.1} parent=31 // loop_header_branch
                %99 = sbr.rel (%p97) target = $region39
              $region36: #{tpu_custom_call.1} parent=31 // loop_body
                %v103 = vld [vmem:[%s101] sm:$0xff]
                %104 = vst [vmem:[%s102] sm:$0xff] %v103
                %v105 = vld [vmem:[%s101 + $0x8] sm:$0xff]
                %106 = vst [vmem:[%s102 + $0x8] sm:$0xff] %v105
                %v107 = vld [vmem:[%s101 + $0x20] sm:$0xff]
                %108 = vst [vmem:[%s102 + $0x10] sm:$0xff] %v107
                %v109 = vld [vmem:[%s101 + $0x28] sm:$0xff]
                %110 = vst [vmem:[%s102 + $0x18] sm:$0xff] %v109
                %v111 = vld [vmem:[%s101 + $0x40] sm:$0xff]
                %112 = vst [vmem:[%s102 + $0x20] sm:$0xff] %v111
                %v113 = vld [vmem:[%s101 + $0x48] sm:$0xff]
                %114 = vst [vmem:[%s102 + $0x28] sm:$0xff] %v113
                %v115 = vld [vmem:[%s101 + $0x60] sm:$0xff]
                %116 = vst [vmem:[%s102 + $0x30] sm:$0xff] %v115
                %v117 = vld [vmem:[%s101 + $0x68] sm:$0xff]
                %118 = vst [vmem:[%s102 + $0x38] sm:$0xff] %v117
              $region37: #{tpu_custom_call.1} parent=31 // loop_footer
                %s100 = sadd.s32 1, %s96
              $region38: #{tpu_custom_call.1} parent=31 // loop_footer_branch
                %95 = sbr.rel target = $region34
              $region39: #{tpu_custom_call.1} parent=31 // loop_exit
                _
            $region32: #{tpu_custom_call.1} parent=23 // pred_fallthru
              _
          $region24: #{tpu_custom_call.1} parent=19 // pred_fallthru
            _
          %147 = vnop
        $region20: #{tpu_custom_call.1} parent=15 // pred_fallthru
          _
      $region16: #{tpu_custom_call.1} parent=5 // pred_fallthru
        _
      %p148 = scmp.le.s32.totalorder 1, %s7
      %p149 = scmp.lt.s32.totalorder %s7, 3
      %p150 = pnand %p148, %p149
      %p151 = pneg %p150
      // Predicated region
      $region55: #{tpu_custom_call.1} parent=5 // pred_check
        _
      $region56: #{tpu_custom_call.1} parent=5 // pred_check_branch
        %153 = sbr.rel (%p150) target = $region58
      $region57: #{tpu_custom_call.1} parent=5 // pred_region
        %s154 = ssub.s32 %s7, 1
        %s155 = sand.u32 %s20, 1
        %s156 = sand.u32 %s20, 1
        %s157 = smul.addr %s156, 64
        %s158 = scalar_lea.vmem [#allocation2], %s157
        // Predicated region
        $region59: #{tpu_custom_call.1} parent=57 // pred_check
          %p159 = pneg %p33
        $region60: #{tpu_custom_call.1} parent=57 // pred_check_branch
          %161 = sbr.rel (%p159) target = $region62
        $region61: #{tpu_custom_call.1} parent=57 // pred_region
          _
        $region62: #{tpu_custom_call.1} parent=57 // pred_fallthru
          _
        %s162 = sand.u32 %s20, 1
        %s163 = sand.u32 %s20, 1
        %s164 = smul.addr %s163, 64
        %s165 = scalar_lea.vmem [#allocation2], %s164
        %p166 = pneg %p33
        %p167 = pneg %p30
        %p168 = pneg %p59
        %p169 = pneg %p56
        %s170 = sand.u32 %s46, 1
        %s171 = sand.u32 %s46, 1
        %s172 = smul.addr %s171, 64
        %s173 = scalar_lea.vmem [#allocation3], %s172
        %s174 = smul.u32 2, %s12
        %s175 = smul.u32 2, %s12
        %v176 = vld [vmem:[%s158] sm:$0xff]
        %v177 = vld [vmem:[%s158 + $0x8] sm:$0xff]
        %v178 = vld [vmem:[%s158 + $0x10] sm:$0xff]
        %v179 = vld [vmem:[%s158 + $0x18] sm:$0xff]
        %v180 = vld [vmem:[%s158 + $0x20] sm:$0xff]
        %v181 = vld [vmem:[%s158 + $0x28] sm:$0xff]
        %v182 = vld [vmem:[%s158 + $0x30] sm:$0xff]
        %v183 = vld [vmem:[%s158 + $0x38] sm:$0xff]
        %v184 = vadd.f32 %v176, %v178
        %v185 = vadd.f32 %v184, %v180
        %v186 = vadd.f32 %v185, %v182
        %v187 = vadd.f32 %v177, %v179
        %v188 = vadd.f32 %v187, %v181
        %v189 = vadd.f32 %v188, %v183
        %v190 = vrcp.pop 4.0
        %v191 = vmul.f32 %v186, %v190
        %v192 = vmul.f32 %v189, %v190
        %v193 = vsub.f32 %v176, %v191
        %v194 = vsub.f32 %v177, %v192
        %v195 = vsub.f32 %v178, %v191
        %v196 = vsub.f32 %v179, %v192
        %v197 = vsub.f32 %v180, %v191
        %v198 = vsub.f32 %v181, %v192
        %v199 = vsub.f32 %v182, %v191
        %v200 = vsub.f32 %v183, %v192
        %v201 = vmul.f32 %v193, %v193
        %v202 = vmul.f32 %v194, %v194
        %v203 = vmul.f32 %v195, %v195
        %v204 = vmul.f32 %v196, %v196
        %v205 = vmul.f32 %v197, %v197
        %v206 = vmul.f32 %v198, %v198
        %v207 = vmul.f32 %v199, %v199
        %v208 = vmul.f32 %v200, %v200
        %v209 = vadd.f32 %v201, %v203
        %v210 = vadd.f32 %v209, %v205
        %v211 = vadd.f32 %v210, %v207
        %v212 = vadd.f32 %v202, %v204
        %v213 = vadd.f32 %v212, %v206
        %v214 = vadd.f32 %v213, %v208
        %v215 = vmul.f32 %v211, %v190
        %v216 = vmul.f32 %v214, %v190
        %v217 = vadd.f32 %v215, 1e-05
        %v218 = vadd.f32 %v216, 1e-05
        %v219 = vrsqrt.pop %v217
        %v220 = vrsqrt.pop %v218
        %v221 = vmul.f32 %v193, %v219
        %v222 = vmul.f32 %v194, %v220
        %v223 = vmul.f32 %v195, %v219
        %v224 = vmul.f32 %v196, %v220
        %v225 = vmul.f32 %v197, %v219
        %v226 = vmul.f32 %v198, %v220
        %v227 = vmul.f32 %v199, %v219
        %v228 = vmul.f32 %v200, %v220
        %229 = vst [vmem:[%s173] sm:$0xff] %v221
        %230 = vst [vmem:[%s173 + $0x8] sm:$0xff] %v222
        %231 = vst [vmem:[%s173 + $0x10] sm:$0xff] %v223
        %232 = vst [vmem:[%s173 + $0x18] sm:$0xff] %v224
        %233 = vst [vmem:[%s173 + $0x20] sm:$0xff] %v225
        %234 = vst [vmem:[%s173 + $0x28] sm:$0xff] %v226
        %235 = vst [vmem:[%s173 + $0x30] sm:$0xff] %v227
        %236 = vst [vmem:[%s173 + $0x38] sm:$0xff] %v228
        %s237 = sand.u32 %s46, 1
        %s238 = sand.u32 %s46, 1
        %s239 = smul.addr %s238, 64
        %s240 = scalar_lea.vmem [#allocation3], %s239
        // Predicated region
        $region63: #{tpu_custom_call.1} parent=57 // pred_check
          %p241 = pneg %p56
        $region64: #{tpu_custom_call.1} parent=57 // pred_check_branch
          %243 = sbr.rel (%p241) target = $region66
        $region65: #{tpu_custom_call.1} parent=57 // pred_region
          %s244 = smul.u32 2, %s12
          %s245 = smul.addr %s244, 8
          %s246 = scalar_lea.vmem %s1, %s245
          // Predicated region
          $region67: #{tpu_custom_call.1} parent=65 // pred_check
            _
          $region68: #{tpu_custom_call.1} parent=65 // pred_check_branch
            %248 = sbr.rel (0) target = $region70
          $region69: #{tpu_custom_call.1} parent=65 // pred_region
            // Predicated region
            $region71: #{tpu_custom_call.1} parent=69 // pred_check
              _
            $region72: #{tpu_custom_call.1} parent=69 // pred_check_branch
              %250 = sbr.rel (0) target = $region74
            $region73: #{tpu_custom_call.1} parent=69 // pred_region
              // Predicated region
              $region86: #{tpu_custom_call.1} parent=73 // pred_check
                _
              $region87: #{tpu_custom_call.1} parent=73 // pred_check_branch
                %279 = sbr.rel (0) target = $region89
              $region88: #{tpu_custom_call.1} parent=73 // pred_region
                loop: start=0, step=1, limit=1
                $region90: #{tpu_custom_call.1} parent=88 // loop_pre_header
                  _
                $region91: #{tpu_custom_call.1} parent=88 // loop_header
                  %s281 = sphi 0, %s285
                  %p282 = scmp.ge.s32.totalorder %s281, 1
                  %s286 = sphi %s240, %s240
                  %s287 = sphi %s246, %s246
                $region92: #{tpu_custom_call.1} parent=88 // loop_header_branch
                  %284 = sbr.rel (%p282) target = $region96
                $region93: #{tpu_custom_call.1} parent=88 // loop_body
                  %v288 = vld [vmem:[%s286] sm:$0xff]
                  %289 = vst [vmem:[%s287] sm:$0xff] %v288
                  %v290 = vld [vmem:[%s286 + $0x8] sm:$0xff]
                  %291 = vst [vmem:[%s287 + $0x8] sm:$0xff] %v290
                  %v292 = vld [vmem:[%s286 + $0x10] sm:$0xff]
                  %293 = vst [vmem:[%s287 + $0x20] sm:$0xff] %v292
                  %v294 = vld [vmem:[%s286 + $0x18] sm:$0xff]
                  %295 = vst [vmem:[%s287 + $0x28] sm:$0xff] %v294
                  %v296 = vld [vmem:[%s286 + $0x20] sm:$0xff]
                  %297 = vst [vmem:[%s287 + $0x40] sm:$0xff] %v296
                  %v298 = vld [vmem:[%s286 + $0x28] sm:$0xff]
                  %299 = vst [vmem:[%s287 + $0x48] sm:$0xff] %v298
                  %v300 = vld [vmem:[%s286 + $0x30] sm:$0xff]
                  %301 = vst [vmem:[%s287 + $0x60] sm:$0xff] %v300
                  %v302 = vld [vmem:[%s286 + $0x38] sm:$0xff]
                  %303 = vst [vmem:[%s287 + $0x68] sm:$0xff] %v302
                $region94: #{tpu_custom_call.1} parent=88 // loop_footer
                  %s285 = sadd.s32 1, %s281
                $region95: #{tpu_custom_call.1} parent=88 // loop_footer_branch
                  %280 = sbr.rel target = $region91
                $region96: #{tpu_custom_call.1} parent=88 // loop_exit
                  _
              $region89: #{tpu_custom_call.1} parent=73 // pred_fallthru
                _
              // Predicated region
              $region97: #{tpu_custom_call.1} parent=73 // pred_check
                _
              $region98: #{tpu_custom_call.1} parent=73 // pred_check_branch
                %305 = sbr.rel target = $region100
              $region99: #{tpu_custom_call.1} parent=73 // pred_region
                _
              $region100: #{tpu_custom_call.1} parent=73 // pred_fallthru
                _
            $region74: #{tpu_custom_call.1} parent=69 // pred_fallthru
              _
            // Predicated region
            $region75: #{tpu_custom_call.1} parent=69 // pred_check
              _
            $region76: #{tpu_custom_call.1} parent=69 // pred_check_branch
              %252 = sbr.rel target = $region78
            $region77: #{tpu_custom_call.1} parent=69 // pred_region
              loop: start=0, step=1, limit=1
              $region79: #{tpu_custom_call.1} parent=77 // loop_pre_header
                _
              $region80: #{tpu_custom_call.1} parent=77 // loop_header
                %s255 = sphi 0, %s259
                %p256 = scmp.ge.s32.totalorder %s255, 1
                %s260 = sphi %s240, %s240
                %s261 = sphi %s246, %s246
              $region81: #{tpu_custom_call.1} parent=77 // loop_header_branch
                %258 = sbr.rel (%p256) target = $region85
              $region82: #{tpu_custom_call.1} parent=77 // loop_body
                %v262 = vld [vmem:[%s260] sm:$0xff]
                %263 = vst [vmem:[%s261] sm:$0xff] %v262
                %v264 = vld [vmem:[%s260 + $0x8] sm:$0xff]
                %265 = vst [vmem:[%s261 + $0x8] sm:$0xff] %v264
                %v266 = vld [vmem:[%s260 + $0x10] sm:$0xff]
                %267 = vst [vmem:[%s261 + $0x20] sm:$0xff] %v266
                %v268 = vld [vmem:[%s260 + $0x18] sm:$0xff]
                %269 = vst [vmem:[%s261 + $0x28] sm:$0xff] %v268
                %v270 = vld [vmem:[%s260 + $0x20] sm:$0xff]
                %271 = vst [vmem:[%s261 + $0x40] sm:$0xff] %v270
                %v272 = vld [vmem:[%s260 + $0x28] sm:$0xff]
                %273 = vst [vmem:[%s261 + $0x48] sm:$0xff] %v272
                %v274 = vld [vmem:[%s260 + $0x30] sm:$0xff]
                %275 = vst [vmem:[%s261 + $0x60] sm:$0xff] %v274
                %v276 = vld [vmem:[%s260 + $0x38] sm:$0xff]
                %277 = vst [vmem:[%s261 + $0x68] sm:$0xff] %v276
              $region83: #{tpu_custom_call.1} parent=77 // loop_footer
                %s259 = sadd.s32 1, %s255
              $region84: #{tpu_custom_call.1} parent=77 // loop_footer_branch
                %254 = sbr.rel target = $region80
              $region85: #{tpu_custom_call.1} parent=77 // loop_exit
                _
            $region78: #{tpu_custom_call.1} parent=69 // pred_fallthru
              _
          $region70: #{tpu_custom_call.1} parent=65 // pred_fallthru
            _
          %306 = vnop
        $region66: #{tpu_custom_call.1} parent=57 // pred_fallthru
          _
      $region58: #{tpu_custom_call.1} parent=5 // pred_fallthru
        _
      %p307 = scmp.le.s32.totalorder 2, %s7
      // Predicated region
      $region101: #{tpu_custom_call.1} parent=5 // pred_check
        %p308 = pneg %p307
      $region102: #{tpu_custom_call.1} parent=5 // pred_check_branch
        %310 = sbr.rel (%p308) target = $region104
      $region103: #{tpu_custom_call.1} parent=5 // pred_region
        %s311 = ssub.s32 %s7, 2
        // Predicated region
        $region105: #{tpu_custom_call.1} parent=103 // pred_check
          %p312 = pneg %p62
        $region106: #{tpu_custom_call.1} parent=103 // pred_check_branch
          %314 = sbr.rel (%p312) target = $region108
        $region107: #{tpu_custom_call.1} parent=103 // pred_region
          %s315 = sand.u32 %s47, 1
          %s316 = sand.u32 %s47, 1
          %s317 = smul.addr %s316, 64
          %s318 = scalar_lea.vmem [#allocation3], %s317
        $region108: #{tpu_custom_call.1} parent=103 // pred_fallthru
          _
      $region104: #{tpu_custom_call.1} parent=5 // pred_fallthru
        _
    $region6: #{tpu_custom_call.1} parent=1 // loop_footer
      %s11 = sadd.s32 1, %s7
    $region7: #{tpu_custom_call.1} parent=1 // loop_footer_branch
      %6 = sbr.rel target = $region3
    $region8: #{tpu_custom_call.1} parent=1 // loop_exit
      _

</llo_original>
